<compile_context>
chip_gen: v6e
topology: v6e:2x2x1
jax: 0.10.0
libtpu: 0.0.40
codegen_flags: <defaults>
</compile_context>

<pallas_src>
import functools

import jax
import jax.numpy as jnp
from jax.experimental import pallas as pl
from jax.experimental.pallas import tpu as pltpu

NEG_SLOPE = 0.2      # PyG GATConv LeakyReLU default
NEG_INF = -1e30      # additive mask value (bf16/f32 safe, not -inf: no 0*inf NaN)
LANE = 128


def _round_up(x, m):
    return ((x + m - 1) // m) * m


# ---------------------------------------------------------------------------
# Fused Pallas kernel
# ---------------------------------------------------------------------------
def _gat_conv(x, w_ref, asrc_ref, adst_ref, b_ref, adj, *, hidden, apply_relu,
              exp_dtype):
    """Single-head GATConv on node features resident in VMEM/vregs (f32 in/out).

    adj: [N, N] int32 (1 on edge j->i incl. self-loops, 0 elsewhere).
    hidden: true feature width H; lanes H..Hp-1 of h are zero (padded weights),
            so lane `hidden` is free to carry the softmax denominator.
    """
    bf16 = jnp.bfloat16
    # h = x @ W : bf16 operands, f32 accumulation (MXU-native path).
    h = jnp.dot(x.astype(bf16), w_ref[...], preferred_element_type=jnp.float32)  # [N,Hp]

    # Attention logits as VPU reductions (no degenerate [N,1]-output MXU dots).
    # (Padded a_src/a_dst lanes are zero, so padded lanes of h contribute 0.)
    a_src = jnp.sum(h * asrc_ref[...], axis=-1, keepdims=True)              # [N, 1]
    a_dst = jnp.sum(h * adst_ref[...], axis=-1, keepdims=True)              # [N, 1]
    e = a_dst + a_src.T                                                     # [N, N], e[i,j]
    e = jnp.where(e > 0, e, NEG_SLOPE * e)                                  # LeakyReLU(0.2)
    # In-kernel masking from the int8 adjacency (one VPU select, no f32 mask DMA).
    e = jnp.where(adj > 0, e, NEG_INF)
    e = e - jnp.max(e, axis=-1, keepdims=True)                              # stable softmax
    # exp in bf16 on v6e/v7x (EUP bf16), f32 on v5e; masked entries underflow to 0.
    p = jnp.exp(e.astype(exp_dtype))

    # Fold the softmax denominator into the p@h MXU pass: write 1.0 into the
    # zero-padded lane `hidden` of h; that output column is then sum_j p[i,j].
    n, hp = h.shape
    lane = jax.lax.broadcasted_iota(jnp.int32, (n, hp), 1)
    h_aug = jnp.where(lane == hidden, 1.0, h)

    out = jnp.dot(p.astype(bf16), h_aug.astype(bf16),
                  preferred_element_type=jnp.float32)                       # [N, Hp]
    denom = out[:, hidden:hidden + 1]                                       # [N, 1] >= ~1
    # Normalize AFTER the matmul; the reciprocal lands on the otherwise-idle EUP.
    out = out * pl.reciprocal(denom, approx=True) + b_ref[...]
    if apply_relu:
        out = jnp.maximum(out, 0.0)
    return out


def _fused_gat_kernel(xoh_ref, emb_ref, adj_ref,
                      w1_ref, as1_ref, ad1_ref, b1_ref,
                      w2_ref, as2_ref, ad2_ref, b2_ref,
                      pool_ref, wm1_ref, bm1_ref, wm2_ref, bm2_ref,
                      o_ref, *, hidden, exp_dtype):
    bf16 = jnp.bfloat16
    # Embedding lookup of one-hot features == one-hot @ table. Both sides are
    # bf16 (one-hot values exact in bf16), f32 accumulation.
    x = jnp.dot(xoh_ref[...], emb_ref[...],
                preferred_element_type=jnp.float32)                         # [N, Hp]
    # int8 adjacency widened once and reused by both layers.
    adj = adj_ref[...].astype(jnp.int32)                                    # [N, N]

    # conv1 + ReLU (dropout = identity at inference), then conv2.
    x = _gat_conv(x, w1_ref, as1_ref, ad1_ref, b1_ref, adj,
                  hidden=hidden, apply_relu=True, exp_dtype=exp_dtype)
    x = _gat_conv(x, w2_ref, as2_ref, ad2_ref, b2_ref, adj,
                  hidden=hidden, apply_relu=False, exp_dtype=exp_dtype)

    # global_add_pool (pool_mat @ x) + Linear -> ReLU -> Linear.
    pooled = jnp.dot(pool_ref[...], x.astype(bf16),
                     preferred_element_type=jnp.float32)                    # [G, Hp]
    hmid = jnp.dot(pooled.astype(bf16), wm1_ref[...],
                   preferred_element_type=jnp.float32) + bm1_ref[...]
    hmid = jnp.maximum(hmid, 0.0)
    o_ref[...] = jnp.dot(hmid.astype(bf16), wm2_ref[...],
                         preferred_element_type=jnp.float32) + bm2_ref[...]


# ---------------------------------------------------------------------------
# Generation-aware knobs
# ---------------------------------------------------------------------------
def _tpu_flags():
    """Returns (use_bf16_exp, vmem_limit_bytes) with safe fallbacks."""
    vmem_cap = 64 * 1024 * 1024          # conservative fallback (v7x-sized)
    try:
        vmem_cap = int(pltpu.get_tpu_info().vmem_capacity_bytes)
    except Exception:
        pass
    use_bf16_exp = False                 # safe default (v5e has no bf16 EUP)
    try:
        kind = jax.devices()[0].device_kind.lower()
        use_bf16_exp = any(t in kind for t in ("v6", "v7", "7x"))
    except Exception:
        pass
    return use_bf16_exp, int(vmem_cap * 0.85)


# ---------------------------------------------------------------------------
# Wrapper: pad to lane-dense layouts, single pallas_call, slice the real classes
# ---------------------------------------------------------------------------
def gat_layer2_forward(params, x_onehot, adj, pool_mat):
    G = pool_mat.shape[0]
    H = params["emb"].shape[1]
    C = params["mlp"][2].shape[1]
    Hp = _round_up(H, LANE)
    if Hp == H:                      # need a spare zero lane for the in-MXU denom
        Hp += LANE
    Cp = _round_up(C, LANE)

    def pad_cols(a, cols, dtype):
        a = a.astype(dtype)
        return jnp.pad(a, ((0, 0), (0, cols - a.shape[1])))

    def pad2(a, rows, cols, dtype):
        a = a.astype(dtype)
        return jnp.pad(a, ((0, rows - a.shape[0]), (0, cols - a.shape[1])))

    W1, a_s1, a_d1, b1 = params["conv1"]
    W2, a_s2, a_d2, b2 = params["conv2"]
    Wm1, bm1, Wm2, bm2 = params["mlp"]

    bf16, f32 = jnp.bfloat16, jnp.float32
    use_bf16_exp, vmem_limit = _tpu_flags()
    exp_dtype = bf16 if use_bf16_exp else f32

    args = (
        x_onehot.astype(bf16),                                   # [N, F]  one-hot (exact)
        pad_cols(params["emb"], Hp, bf16),                       # [F, Hp]
        (adj > 0).astype(jnp.int8),                              # [N, N]  int8 adjacency
        pad2(W1, Hp, Hp, bf16), pad_cols(a_s1, Hp, f32),
        pad_cols(a_d1, Hp, f32), pad_cols(b1, Hp, f32),
        pad2(W2, Hp, Hp, bf16), pad_cols(a_s2, Hp, f32),
        pad_cols(a_d2, Hp, f32), pad_cols(b2, Hp, f32),
        pool_mat.astype(bf16),                                   # [G, N]  0/1 (exact)
        pad2(Wm1, Hp, Hp, bf16), pad_cols(bm1, Hp, f32),
        pad2(Wm2, Hp, Cp, bf16), pad_cols(bm2, Cp, f32),
    )

    kernel = functools.partial(_fused_gat_kernel, hidden=H, exp_dtype=exp_dtype)
    vmem_spec = pl.BlockSpec(memory_space=pltpu.MemorySpace.VMEM)
    out_padded = pl.pallas_call(
        kernel,
        out_shape=jax.ShapeDtypeStruct((G, Cp), jnp.float32),
        in_specs=[vmem_spec] * len(args),
        out_specs=vmem_spec,
        compiler_params=pltpu.CompilerParams(vmem_limit_bytes=vmem_limit),
    )(*args)
    return out_padded[:, :C]


# ---------------------------------------------------------------------------
# Parameters
# ---------------------------------------------------------------------------
def init_params(key, num_node_features, hidden, num_classes):
    ks = jax.random.split(key, 9)

    def lin_w(k, fan_in, fan_out):
        return (jax.random.normal(k, (fan_in, fan_out), jnp.float32)
                / jnp.sqrt(jnp.float32(fan_in)))

    def gat_params(k0, k1, k2, in_dim, out_dim):
        return (lin_w(k0, in_dim, out_dim),                                # W
                jax.random.normal(k1, (1, out_dim), jnp.float32) * 0.1,    # a_src
                jax.random.normal(k2, (1, out_dim), jnp.float32) * 0.1,    # a_dst
                jnp.zeros((1, out_dim), jnp.float32))                      # bias

    return {
        "emb": jax.random.normal(ks[0], (num_node_features, hidden), jnp.float32),
        "conv1": gat_params(ks[1], ks[2], ks[3], hidden, hidden),
        "conv2": gat_params(ks[4], ks[5], ks[6], hidden, hidden),
        "mlp": (lin_w(ks[7], hidden, hidden),
                jnp.zeros((1, hidden), jnp.float32),
                lin_w(ks[8], hidden, num_classes),
                jnp.zeros((1, num_classes), jnp.float32)),
    }


# ---------------------------------------------------------------------------
# Example
# ---------------------------------------------------------------------------
if __name__ == "__main__":
    N = 16                 # total nodes (2 graphs x 8 nodes)
    NUM_NODE_FEATURES = 8  # one-hot node feature dimension
    HIDDEN = 16
    NUM_CLASSES = 4
    NUM_GRAPHS = 2

    key = jax.random.PRNGKey(0)
    k_feat, k_param = jax.random.split(key)

    # One-hot node features (like dataset.x with categorical node types).
    feat_idx = jax.random.randint(k_feat, (N,), 0, NUM_NODE_FEATURES)
    x_onehot = jax.nn.one_hot(feat_idx, NUM_NODE_FEATURES, dtype=jnp.float32)  # [16, 8]

    # edge_index: directed ring inside each 8-node graph, both directions.
    src, dst = [], []
    for g in range(NUM_GRAPHS):
        base = g * 8
        for i in range(8):
            a, b = base + i, base + (i + 1) % 8
            src += [a, b]
            dst += [b, a]
    src = jnp.array(src, dtype=jnp.int32)
    dst = jnp.array(dst, dtype=jnp.int32)

    # Dense adjacency with self-loops: adj[i, j] = 1 iff edge j -> i.
    adj = jnp.zeros((N, N), jnp.float32).at[dst, src].set(1.0)
    adj = adj + jnp.eye(N, dtype=jnp.float32)

    # Graph assignment -> pooling matrix [G, N].
    batch = jnp.array([0] * 8 + [1] * 8, dtype=jnp.int32)
    pool_mat = jax.nn.one_hot(batch, NUM_GRAPHS, dtype=jnp.float32).T          # [2, 16]

    params = init_params(k_param, NUM_NODE_FEATURES, HIDDEN, NUM_CLASSES)

    fwd = jax.jit(gat_layer2_forward)
    out = fwd(params, x_onehot, adj, pool_mat)
    out = jax.block_until_ready(out)
    assert out.shape == (NUM_GRAPHS, NUM_CLASSES)
    assert bool(jnp.all(jnp.isfinite(out)))
    print("KERNEL_OK")
</pallas_src>

<mosaic_0001>
module attributes {stable_mosaic.version = 11 : i64} {
  func.func @_fused_gat_kernel(%arg0: memref<16x8xbf16, #tpu.memory_space<vmem>>, %arg1: memref<8x128xbf16, #tpu.memory_space<vmem>>, %arg2: memref<16x16xi8, #tpu.memory_space<vmem>>, %arg3: memref<128x128xbf16, #tpu.memory_space<vmem>>, %arg4: memref<1x128xf32, #tpu.memory_space<vmem>>, %arg5: memref<1x128xf32, #tpu.memory_space<vmem>>, %arg6: memref<1x128xf32, #tpu.memory_space<vmem>>, %arg7: memref<128x128xbf16, #tpu.memory_space<vmem>>, %arg8: memref<1x128xf32, #tpu.memory_space<vmem>>, %arg9: memref<1x128xf32, #tpu.memory_space<vmem>>, %arg10: memref<1x128xf32, #tpu.memory_space<vmem>>, %arg11: memref<2x16xbf16, #tpu.memory_space<vmem>>, %arg12: memref<128x128xbf16, #tpu.memory_space<vmem>>, %arg13: memref<1x128xf32, #tpu.memory_space<vmem>>, %arg14: memref<128x128xbf16, #tpu.memory_space<vmem>>, %arg15: memref<1x128xf32, #tpu.memory_space<vmem>>, %arg16: memref<2x128xf32, #tpu.memory_space<vmem>>) attributes {dimension_semantics = [], scalar_prefetch = 0 : i64, scratch_operands = 0 : i64, tpu.core_type = #tpu.core_type<tc>} {
    %c0 = arith.constant 0 : index
    %c0_0 = arith.constant 0 : index
    %0 = vector.load %arg0[%c0, %c0_0] : memref<16x8xbf16, #tpu.memory_space<vmem>>, vector<16x8xbf16>
    %c0_1 = arith.constant 0 : index
    %c0_2 = arith.constant 0 : index
    %1 = vector.load %arg1[%c0_1, %c0_2] : memref<8x128xbf16, #tpu.memory_space<vmem>>, vector<8x128xbf16>
    %cst = arith.constant dense<0.000000e+00> : vector<16x128xf32>
    %2 = tpu.matmul %0, %1, %cst {dimension_numbers = #tpu.dot_dimension_numbers<[1], [0], [0], [1], [0, 0, 1, 1], [], []>} : vector<16x8xbf16>, vector<8x128xbf16>, vector<16x128xf32> -> vector<16x128xf32>
    %c0_3 = arith.constant 0 : index
    %c0_4 = arith.constant 0 : index
    %3 = vector.load %arg2[%c0_3, %c0_4] : memref<16x16xi8, #tpu.memory_space<vmem>>, vector<16x16xi8>
    %4 = arith.extsi %3 : vector<16x16xi8> to vector<16x16xi32>
    %5 = arith.truncf %2 : vector<16x128xf32> to vector<16x128xbf16>
    %c0_5 = arith.constant 0 : index
    %c0_6 = arith.constant 0 : index
    %6 = vector.load %arg3[%c0_5, %c0_6] : memref<128x128xbf16, #tpu.memory_space<vmem>>, vector<128x128xbf16>
    %cst_7 = arith.constant dense<0.000000e+00> : vector<16x128xf32>
    %7 = tpu.matmul %5, %6, %cst_7 {dimension_numbers = #tpu.dot_dimension_numbers<[1], [0], [0], [1], [0, 0, 1, 1], [], []>} : vector<16x128xbf16>, vector<128x128xbf16>, vector<16x128xf32> -> vector<16x128xf32>
    %c0_8 = arith.constant 0 : index
    %c0_9 = arith.constant 0 : index
    %8 = vector.load %arg4[%c0_8, %c0_9] : memref<1x128xf32, #tpu.memory_space<vmem>>, vector<1x128xf32>
    %9 = vector.broadcast %8 : vector<1x128xf32> to vector<16x128xf32>
    %10 = arith.mulf %7, %9 : vector<16x128xf32>
    %cst_10 = arith.constant dense<0.000000e+00> : vector<16xf32>
    %11 = vector.multi_reduction <add>, %10, %cst_10 [1] : vector<16x128xf32> to vector<16xf32>
    %12 = vector.shape_cast %11 : vector<16xf32> to vector<16x1xf32>
    %c0_11 = arith.constant 0 : index
    %c0_12 = arith.constant 0 : index
    %13 = vector.load %arg5[%c0_11, %c0_12] : memref<1x128xf32, #tpu.memory_space<vmem>>, vector<1x128xf32>
    %14 = vector.broadcast %13 : vector<1x128xf32> to vector<16x128xf32>
    %15 = arith.mulf %7, %14 : vector<16x128xf32>
    %cst_13 = arith.constant dense<0.000000e+00> : vector<16xf32>
    %16 = vector.multi_reduction <add>, %15, %cst_13 [1] : vector<16x128xf32> to vector<16xf32>
    %17 = vector.shape_cast %16 : vector<16xf32> to vector<16x1xf32>
    %18 = tpu.transpose %12, [1, 0] : vector<16x1xf32> -> vector<1x16xf32>
    %19 = vector.broadcast %17 : vector<16x1xf32> to vector<16x16xf32>
    %20 = vector.broadcast %18 : vector<1x16xf32> to vector<16x16xf32>
    %21 = arith.addf %19, %20 : vector<16x16xf32>
    %cst_14 = arith.constant 0.000000e+00 : f32
    %22 = vector.broadcast %cst_14 : f32 to vector<16x16xf32>
    %23 = arith.cmpf ogt, %21, %22 : vector<16x16xf32>
    %cst_15 = arith.constant 2.000000e-01 : f32
    %24 = vector.broadcast %cst_15 : f32 to vector<16x16xf32>
    %25 = arith.mulf %24, %21 : vector<16x16xf32>
    %26 = arith.select %23, %21, %25 : vector<16x16xi1>, vector<16x16xf32>
    %c0_i32 = arith.constant 0 : i32
    %27 = vector.broadcast %c0_i32 : i32 to vector<16x16xi32>
    %28 = arith.cmpi sgt, %4, %27 : vector<16x16xi32>
    %cst_16 = arith.constant -1.000000e+30 : f32
    %29 = vector.broadcast %cst_16 : f32 to vector<16x16xf32>
    %30 = arith.select %28, %26, %29 : vector<16x16xi1>, vector<16x16xf32>
    %cst_17 = arith.constant dense<0xFF800000> : vector<16xf32>
    %31 = vector.multi_reduction <maximumf>, %30, %cst_17 [1] : vector<16x16xf32> to vector<16xf32>
    %32 = vector.shape_cast %31 : vector<16xf32> to vector<16x1xf32>
    %33 = vector.broadcast %32 : vector<16x1xf32> to vector<16x16xf32>
    %34 = arith.subf %30, %33 : vector<16x16xf32>
    %35 = math.exp %34 : vector<16x16xf32>
    %36 = tpu.iota {dimensions = array<i32: 1>} : vector<16x128xi32>
    %c16_i32 = arith.constant 16 : i32
    %37 = vector.broadcast %c16_i32 : i32 to vector<16x128xi32>
    %38 = arith.cmpi eq, %36, %37 : vector<16x128xi32>
    %cst_18 = arith.constant 1.000000e+00 : f32
    %39 = vector.broadcast %cst_18 : f32 to vector<16x128xf32>
    %40 = arith.select %38, %39, %7 : vector<16x128xi1>, vector<16x128xf32>
    %41 = arith.truncf %35 : vector<16x16xf32> to vector<16x16xbf16>
    %42 = arith.truncf %40 : vector<16x128xf32> to vector<16x128xbf16>
    %cst_19 = arith.constant dense<0.000000e+00> : vector<16x128xf32>
    %43 = tpu.matmul %41, %42, %cst_19 {dimension_numbers = #tpu.dot_dimension_numbers<[1], [0], [0], [1], [0, 0, 1, 1], [], []>} : vector<16x16xbf16>, vector<16x128xbf16>, vector<16x128xf32> -> vector<16x128xf32>
    %44 = vector.extract_strided_slice %43 {offsets = [0, 16], sizes = [16, 1], strides = [1, 1]} : vector<16x128xf32> to vector<16x1xf32>
    %45 = tpu.reciprocal %44 {approx = true} : vector<16x1xf32> -> vector<16x1xf32>
    %46 = vector.broadcast %45 : vector<16x1xf32> to vector<16x128xf32>
    %47 = arith.mulf %43, %46 : vector<16x128xf32>
    %c0_20 = arith.constant 0 : index
    %c0_21 = arith.constant 0 : index
    %48 = vector.load %arg6[%c0_20, %c0_21] : memref<1x128xf32, #tpu.memory_space<vmem>>, vector<1x128xf32>
    %49 = vector.broadcast %48 : vector<1x128xf32> to vector<16x128xf32>
    %50 = arith.addf %47, %49 : vector<16x128xf32>
    %cst_22 = arith.constant 0.000000e+00 : f32
    %51 = vector.broadcast %cst_22 : f32 to vector<16x128xf32>
    %52 = arith.maximumf %50, %51 : vector<16x128xf32>
    %53 = arith.truncf %52 : vector<16x128xf32> to vector<16x128xbf16>
    %c0_23 = arith.constant 0 : index
    %c0_24 = arith.constant 0 : index
    %54 = vector.load %arg7[%c0_23, %c0_24] : memref<128x128xbf16, #tpu.memory_space<vmem>>, vector<128x128xbf16>
    %cst_25 = arith.constant dense<0.000000e+00> : vector<16x128xf32>
    %55 = tpu.matmul %53, %54, %cst_25 {dimension_numbers = #tpu.dot_dimension_numbers<[1], [0], [0], [1], [0, 0, 1, 1], [], []>} : vector<16x128xbf16>, vector<128x128xbf16>, vector<16x128xf32> -> vector<16x128xf32>
    %c0_26 = arith.constant 0 : index
    %c0_27 = arith.constant 0 : index
    %56 = vector.load %arg8[%c0_26, %c0_27] : memref<1x128xf32, #tpu.memory_space<vmem>>, vector<1x128xf32>
    %57 = vector.broadcast %56 : vector<1x128xf32> to vector<16x128xf32>
    %58 = arith.mulf %55, %57 : vector<16x128xf32>
    %cst_28 = arith.constant dense<0.000000e+00> : vector<16xf32>
    %59 = vector.multi_reduction <add>, %58, %cst_28 [1] : vector<16x128xf32> to vector<16xf32>
    %60 = vector.shape_cast %59 : vector<16xf32> to vector<16x1xf32>
    %c0_29 = arith.constant 0 : index
    %c0_30 = arith.constant 0 : index
    %61 = vector.load %arg9[%c0_29, %c0_30] : memref<1x128xf32, #tpu.memory_space<vmem>>, vector<1x128xf32>
    %62 = vector.broadcast %61 : vector<1x128xf32> to vector<16x128xf32>
    %63 = arith.mulf %55, %62 : vector<16x128xf32>
    %cst_31 = arith.constant dense<0.000000e+00> : vector<16xf32>
    %64 = vector.multi_reduction <add>, %63, %cst_31 [1] : vector<16x128xf32> to vector<16xf32>
    %65 = vector.shape_cast %64 : vector<16xf32> to vector<16x1xf32>
    %66 = tpu.transpose %60, [1, 0] : vector<16x1xf32> -> vector<1x16xf32>
    %67 = vector.broadcast %65 : vector<16x1xf32> to vector<16x16xf32>
    %68 = vector.broadcast %66 : vector<1x16xf32> to vector<16x16xf32>
    %69 = arith.addf %67, %68 : vector<16x16xf32>
    %cst_32 = arith.constant 0.000000e+00 : f32
    %70 = vector.broadcast %cst_32 : f32 to vector<16x16xf32>
    %71 = arith.cmpf ogt, %69, %70 : vector<16x16xf32>
    %cst_33 = arith.constant 2.000000e-01 : f32
    %72 = vector.broadcast %cst_33 : f32 to vector<16x16xf32>
    %73 = arith.mulf %72, %69 : vector<16x16xf32>
    %74 = arith.select %71, %69, %73 : vector<16x16xi1>, vector<16x16xf32>
    %c0_i32_34 = arith.constant 0 : i32
    %75 = vector.broadcast %c0_i32_34 : i32 to vector<16x16xi32>
    %76 = arith.cmpi sgt, %4, %75 : vector<16x16xi32>
    %cst_35 = arith.constant -1.000000e+30 : f32
    %77 = vector.broadcast %cst_35 : f32 to vector<16x16xf32>
    %78 = arith.select %76, %74, %77 : vector<16x16xi1>, vector<16x16xf32>
    %cst_36 = arith.constant dense<0xFF800000> : vector<16xf32>
    %79 = vector.multi_reduction <maximumf>, %78, %cst_36 [1] : vector<16x16xf32> to vector<16xf32>
    %80 = vector.shape_cast %79 : vector<16xf32> to vector<16x1xf32>
    %81 = vector.broadcast %80 : vector<16x1xf32> to vector<16x16xf32>
    %82 = arith.subf %78, %81 : vector<16x16xf32>
    %83 = math.exp %82 : vector<16x16xf32>
    %84 = tpu.iota {dimensions = array<i32: 1>} : vector<16x128xi32>
    %c16_i32_37 = arith.constant 16 : i32
    %85 = vector.broadcast %c16_i32_37 : i32 to vector<16x128xi32>
    %86 = arith.cmpi eq, %84, %85 : vector<16x128xi32>
    %cst_38 = arith.constant 1.000000e+00 : f32
    %87 = vector.broadcast %cst_38 : f32 to vector<16x128xf32>
    %88 = arith.select %86, %87, %55 : vector<16x128xi1>, vector<16x128xf32>
    %89 = arith.truncf %83 : vector<16x16xf32> to vector<16x16xbf16>
    %90 = arith.truncf %88 : vector<16x128xf32> to vector<16x128xbf16>
    %cst_39 = arith.constant dense<0.000000e+00> : vector<16x128xf32>
    %91 = tpu.matmul %89, %90, %cst_39 {dimension_numbers = #tpu.dot_dimension_numbers<[1], [0], [0], [1], [0, 0, 1, 1], [], []>} : vector<16x16xbf16>, vector<16x128xbf16>, vector<16x128xf32> -> vector<16x128xf32>
    %92 = vector.extract_strided_slice %91 {offsets = [0, 16], sizes = [16, 1], strides = [1, 1]} : vector<16x128xf32> to vector<16x1xf32>
    %93 = tpu.reciprocal %92 {approx = true} : vector<16x1xf32> -> vector<16x1xf32>
    %94 = vector.broadcast %93 : vector<16x1xf32> to vector<16x128xf32>
    %95 = arith.mulf %91, %94 : vector<16x128xf32>
    %c0_40 = arith.constant 0 : index
    %c0_41 = arith.constant 0 : index
    %96 = vector.load %arg10[%c0_40, %c0_41] : memref<1x128xf32, #tpu.memory_space<vmem>>, vector<1x128xf32>
    %97 = vector.broadcast %96 : vector<1x128xf32> to vector<16x128xf32>
    %98 = arith.addf %95, %97 : vector<16x128xf32>
    %c0_42 = arith.constant 0 : index
    %c0_43 = arith.constant 0 : index
    %99 = vector.load %arg11[%c0_42, %c0_43] : memref<2x16xbf16, #tpu.memory_space<vmem>>, vector<2x16xbf16>
    %100 = arith.truncf %98 : vector<16x128xf32> to vector<16x128xbf16>
    %cst_44 = arith.constant dense<0.000000e+00> : vector<2x128xf32>
    %101 = tpu.matmul %99, %100, %cst_44 {dimension_numbers = #tpu.dot_dimension_numbers<[1], [0], [0], [1], [0, 0, 1, 1], [], []>} : vector<2x16xbf16>, vector<16x128xbf16>, vector<2x128xf32> -> vector<2x128xf32>
    %102 = arith.truncf %101 : vector<2x128xf32> to vector<2x128xbf16>
    %c0_45 = arith.constant 0 : index
    %c0_46 = arith.constant 0 : index
    %103 = vector.load %arg12[%c0_45, %c0_46] : memref<128x128xbf16, #tpu.memory_space<vmem>>, vector<128x128xbf16>
    %cst_47 = arith.constant dense<0.000000e+00> : vector<2x128xf32>
    %104 = tpu.matmul %102, %103, %cst_47 {dimension_numbers = #tpu.dot_dimension_numbers<[1], [0], [0], [1], [0, 0, 1, 1], [], []>} : vector<2x128xbf16>, vector<128x128xbf16>, vector<2x128xf32> -> vector<2x128xf32>
    %c0_48 = arith.constant 0 : index
    %c0_49 = arith.constant 0 : index
    %105 = vector.load %arg13[%c0_48, %c0_49] : memref<1x128xf32, #tpu.memory_space<vmem>>, vector<1x128xf32>
    %106 = vector.broadcast %105 : vector<1x128xf32> to vector<2x128xf32>
    %107 = arith.addf %104, %106 : vector<2x128xf32>
    %cst_50 = arith.constant 0.000000e+00 : f32
    %108 = vector.broadcast %cst_50 : f32 to vector<2x128xf32>
    %109 = arith.maximumf %107, %108 : vector<2x128xf32>
    %110 = arith.truncf %109 : vector<2x128xf32> to vector<2x128xbf16>
    %c0_51 = arith.constant 0 : index
    %c0_52 = arith.constant 0 : index
    %111 = vector.load %arg14[%c0_51, %c0_52] : memref<128x128xbf16, #tpu.memory_space<vmem>>, vector<128x128xbf16>
    %cst_53 = arith.constant dense<0.000000e+00> : vector<2x128xf32>
    %112 = tpu.matmul %110, %111, %cst_53 {dimension_numbers = #tpu.dot_dimension_numbers<[1], [0], [0], [1], [0, 0, 1, 1], [], []>} : vector<2x128xbf16>, vector<128x128xbf16>, vector<2x128xf32> -> vector<2x128xf32>
    %c0_54 = arith.constant 0 : index
    %c0_55 = arith.constant 0 : index
    %113 = vector.load %arg15[%c0_54, %c0_55] : memref<1x128xf32, #tpu.memory_space<vmem>>, vector<1x128xf32>
    %114 = vector.broadcast %113 : vector<1x128xf32> to vector<2x128xf32>
    %115 = arith.addf %112, %114 : vector<2x128xf32>
    %c0_56 = arith.constant 0 : index
    %c0_57 = arith.constant 0 : index
    %116 = vector.load %arg16[%c0_56, %c0_57] : memref<2x128xf32, #tpu.memory_space<vmem>>, vector<2x128xf32>
    tpu.vector_store %arg16[%c0_56, %c0_57], %115 {strides = array<i32>} : memref<2x128xf32, #tpu.memory_space<vmem>>, vector<2x128xf32>,
    return
  }
}

</mosaic_0001>

<llo_original>
// kernel: gat_layer2_forward.1
$region0: #{gat_layer2_forward.1}
  #allocation0 [shape = 'u32[]', space=smem, size = 0x4, offset = 0x4, fixed_abs, tag = 'smem constant byte address 0x4 - core index']
  #allocation1 [shape = 'u32[144,128]{1,0:T(1,128)}', space=vmem, size = 0x12000, scoped, tag = 'internal scratch']
  %s0 = inlined_call_operand.vmem [shape: bf16[16,8], index: 0, kind: input, shape index: {}]
  %s1 = inlined_call_operand.vmem [shape: bf16[8,128], index: 1, kind: input, shape index: {}]
  %s2 = inlined_call_operand.vmem [shape: s8[16,16], index: 2, kind: input, shape index: {}]
  %s3 = inlined_call_operand.vmem [shape: bf16[128,128], index: 3, kind: input, shape index: {}]
  %s4 = inlined_call_operand.vmem [shape: f32[1,128], index: 4, kind: input, shape index: {}]
  %s5 = inlined_call_operand.vmem [shape: f32[1,128], index: 5, kind: input, shape index: {}]
  %s6 = inlined_call_operand.vmem [shape: f32[1,128], index: 6, kind: input, shape index: {}]
  %s7 = inlined_call_operand.vmem [shape: bf16[128,128], index: 7, kind: input, shape index: {}]
  %s8 = inlined_call_operand.vmem [shape: f32[1,128], index: 8, kind: input, shape index: {}]
  %s9 = inlined_call_operand.vmem [shape: f32[1,128], index: 9, kind: input, shape index: {}]
  %s10 = inlined_call_operand.vmem [shape: f32[1,128], index: 10, kind: input, shape index: {}]
  %s11 = inlined_call_operand.vmem [shape: bf16[2,16], index: 11, kind: input, shape index: {}]
  %s12 = inlined_call_operand.vmem [shape: bf16[128,128], index: 12, kind: input, shape index: {}]
  %s13 = inlined_call_operand.vmem [shape: f32[1,128], index: 13, kind: input, shape index: {}]
  %s14 = inlined_call_operand.vmem [shape: bf16[128,128], index: 14, kind: input, shape index: {}]
  %s15 = inlined_call_operand.vmem [shape: f32[1,128], index: 15, kind: input, shape index: {}]
  %s16 = inlined_call_operand.hbm [shape: f32[2,128], index: 16, kind: output, shape index: {}]
  %s17 = sld [smem:[#allocation0]]
  $region74: #{gat_layer2_forward.1} parent=0
    _
  %s19 = ssub.s32 1, %s17
  %s20 = scalar_select 0, %s19, %s17
  $region1: #{gat_layer2_forward.1} parent=0
    #allocation2 [shape = 'u8[1024]{0}', space=vmem, size = 0x400, scoped, tag = 'output window, operand 0, single buffered']
    #allocation3 [shape = 's32[1]{0}', space=sflag, size = 0x4, scoped, tag = 'scoped memory for gat_layer2_forward.1']
    %21 = vsyncpa [#allocation3], 0
    // Predicated region
    $region2: #{gat_layer2_forward.1} parent=1 // pred_check
      _
    $region3: #{gat_layer2_forward.1} parent=1 // pred_check_branch
      %23 = sbr.rel (0) target = $region5
    $region4: #{gat_layer2_forward.1} parent=1 // pred_region
      _
    $region5: #{gat_layer2_forward.1} parent=1 // pred_fallthru
      _
    // Predicated region
    $region6: #{gat_layer2_forward.1} parent=1 // pred_check
      _
    $region7: #{gat_layer2_forward.1} parent=1 // pred_check_branch
      %25 = sbr.rel (0) target = $region9
    $region8: #{gat_layer2_forward.1} parent=1 // pred_region
      _
    $region9: #{gat_layer2_forward.1} parent=1 // pred_fallthru
      _
    // Predicated region
    $region10: #{gat_layer2_forward.1} parent=1 // pred_check
      _
    $region11: #{gat_layer2_forward.1} parent=1 // pred_check_branch
      %27 = sbr.rel (0) target = $region13
    $region12: #{gat_layer2_forward.1} parent=1 // pred_region
      _
    $region13: #{gat_layer2_forward.1} parent=1 // pred_fallthru
      _
    // Predicated region
    $region14: #{gat_layer2_forward.1} parent=1 // pred_check
      _
    $region15: #{gat_layer2_forward.1} parent=1 // pred_check_branch
      %29 = sbr.rel (0) target = $region17
    $region16: #{gat_layer2_forward.1} parent=1 // pred_region
      _
    $region17: #{gat_layer2_forward.1} parent=1 // pred_fallthru
      _
    // Predicated region
    $region18: #{gat_layer2_forward.1} parent=1 // pred_check
      _
    $region19: #{gat_layer2_forward.1} parent=1 // pred_check_branch
      %31 = sbr.rel (0) target = $region21
    $region20: #{gat_layer2_forward.1} parent=1 // pred_region
      _
    $region21: #{gat_layer2_forward.1} parent=1 // pred_fallthru
      _
    // Predicated region
    $region22: #{gat_layer2_forward.1} parent=1 // pred_check
      _
    $region23: #{gat_layer2_forward.1} parent=1 // pred_check_branch
      %33 = sbr.rel (0) target = $region25
    $region24: #{gat_layer2_forward.1} parent=1 // pred_region
      _
    $region25: #{gat_layer2_forward.1} parent=1 // pred_fallthru
      _
    // Predicated region
    $region26: #{gat_layer2_forward.1} parent=1 // pred_check
      _
    $region27: #{gat_layer2_forward.1} parent=1 // pred_check_branch
      %35 = sbr.rel (0) target = $region29
    $region28: #{gat_layer2_forward.1} parent=1 // pred_region
      _
    $region29: #{gat_layer2_forward.1} parent=1 // pred_fallthru
      _
    // Predicated region
    $region30: #{gat_layer2_forward.1} parent=1 // pred_check
      _
    $region31: #{gat_layer2_forward.1} parent=1 // pred_check_branch
      %37 = sbr.rel (0) target = $region33
    $region32: #{gat_layer2_forward.1} parent=1 // pred_region
      _
    $region33: #{gat_layer2_forward.1} parent=1 // pred_fallthru
      _
    // Predicated region
    $region34: #{gat_layer2_forward.1} parent=1 // pred_check
      _
    $region35: #{gat_layer2_forward.1} parent=1 // pred_check_branch
      %39 = sbr.rel (0) target = $region37
    $region36: #{gat_layer2_forward.1} parent=1 // pred_region
      _
    $region37: #{gat_layer2_forward.1} parent=1 // pred_fallthru
      _
    // Predicated region
    $region38: #{gat_layer2_forward.1} parent=1 // pred_check
      _
    $region39: #{gat_layer2_forward.1} parent=1 // pred_check_branch
      %41 = sbr.rel (0) target = $region41
    $region40: #{gat_layer2_forward.1} parent=1 // pred_region
      _
    $region41: #{gat_layer2_forward.1} parent=1 // pred_fallthru
      _
    // Predicated region
    $region42: #{gat_layer2_forward.1} parent=1 // pred_check
      _
    $region43: #{gat_layer2_forward.1} parent=1 // pred_check_branch
      %43 = sbr.rel (0) target = $region45
    $region44: #{gat_layer2_forward.1} parent=1 // pred_region
      _
    $region45: #{gat_layer2_forward.1} parent=1 // pred_fallthru
      _
    // Predicated region
    $region46: #{gat_layer2_forward.1} parent=1 // pred_check
      _
    $region47: #{gat_layer2_forward.1} parent=1 // pred_check_branch
      %45 = sbr.rel (0) target = $region49
    $region48: #{gat_layer2_forward.1} parent=1 // pred_region
      _
    $region49: #{gat_layer2_forward.1} parent=1 // pred_fallthru
      _
    // Predicated region
    $region50: #{gat_layer2_forward.1} parent=1 // pred_check
      _
    $region51: #{gat_layer2_forward.1} parent=1 // pred_check_branch
      %47 = sbr.rel (0) target = $region53
    $region52: #{gat_layer2_forward.1} parent=1 // pred_region
      _
    $region53: #{gat_layer2_forward.1} parent=1 // pred_fallthru
      _
    // Predicated region
    $region54: #{gat_layer2_forward.1} parent=1 // pred_check
      _
    $region55: #{gat_layer2_forward.1} parent=1 // pred_check_branch
      %49 = sbr.rel (0) target = $region57
    $region56: #{gat_layer2_forward.1} parent=1 // pred_region
      _
    $region57: #{gat_layer2_forward.1} parent=1 // pred_fallthru
      _
    // Predicated region
    $region58: #{gat_layer2_forward.1} parent=1 // pred_check
      _
    $region59: #{gat_layer2_forward.1} parent=1 // pred_check_branch
      %51 = sbr.rel (0) target = $region61
    $region60: #{gat_layer2_forward.1} parent=1 // pred_region
      _
    $region61: #{gat_layer2_forward.1} parent=1 // pred_fallthru
      _
    // Predicated region
    $region62: #{gat_layer2_forward.1} parent=1 // pred_check
      _
    $region63: #{gat_layer2_forward.1} parent=1 // pred_check_branch
      %53 = sbr.rel (0) target = $region65
    $region64: #{gat_layer2_forward.1} parent=1 // pred_region
      _
    $region65: #{gat_layer2_forward.1} parent=1 // pred_fallthru
      _
    %v55 = vld [vmem:[%s0] sm:$0xf]
    %v56 = vld [vmem:[%s0 + $0x4] sm:$0xf]
    %v57 = vld [vmem:[%s1] sm:$0xf]
    %v60 = vunpack.c.l.b16 %v55
    %v61 = vunpack.c.l.b16 %v56
    %v62 = vpack.c.b16 %v61, %v60
    %vm63 = vcmask 64512
    %v65 = vsel %vm63, %v62, 0
    %vm67 = vcmask 1043456
    %v69 = vsel %vm67, %v57, 0
    %71 = vmatprep.subr.bf16.mxu0 0
    %72 = vmatpush1.bf16.msra.mxu0 0
    %73 = vmatprep.subr.bf16.mxu0 0
    %74 = vmatpush1.bf16.msra.mxu0 0
    %75 = vmatprep.subr.bf16.mxu0 0
    %76 = vmatpush1.bf16.msra.mxu0 0
    %77 = vmatprep.subr.bf16.mxu0 0
    %78 = vmatpush1.bf16.msra.mxu0 0
    %79 = vmatprep.subr.bf16.mxu0 0
    %80 = vmatpush1.bf16.msra.mxu0 0
    %81 = vmatprep.subr.bf16.mxu0 0
    %82 = vmatpush1.bf16.msra.mxu0 0
    %83 = vmatprep.subr.bf16.mxu0 0
    %84 = vmatpush1.bf16.msra.mxu0 0
    %85 = vmatprep.subr.bf16.mxu0 0
    %86 = vmatpush1.bf16.msra.mxu0 %v69
    %87 = vmatprep.subr.bf16.mxu0 0
    %88 = vmatpush2.bf16.msra.mxu0 0
    %89 = vmatprep.subr.bf16.mxu0 0
    %90 = vmatpush2.bf16.msra.mxu0 0
    %91 = vmatprep.subr.bf16.mxu0 0
    %92 = vmatpush2.bf16.msra.mxu0 0
    %93 = vmatprep.subr.bf16.mxu0 0
    %94 = vmatpush2.bf16.msra.mxu0 0
    %95 = vmatprep.subr.bf16.mxu0 0
    %96 = vmatpush2.bf16.msra.mxu0 0
    %97 = vmatprep.subr.bf16.mxu0 0
    %98 = vmatpush2.bf16.msra.mxu0 0
    %99 = vmatprep.subr.bf16.mxu0 0
    %100 = vmatpush2.bf16.msra.mxu0 0
    %101 = vmatprep.subr.bf16.mxu0 0
    %102 = vmatpush2.bf16.msra.mxu0 0
    %103 = vmatprep.mubr.bf16.mxu0 0
    %104 = vmatmul.mubr.bf16.gmra.mxu0 %v65
    %v105 = vpop.f32.mrf.mxu0
    %v106 = vadd.f32 0.0, %v105
    %v107 = vpop.f32.mrf.mxu0
    %v108 = vpop.f32.mrf.mxu0
    %v109 = vadd.f32 0.0, %v108
    %v110 = vpop.f32.mrf.mxu0
    %111 = vdwg.mxu0
    %v112 = vld [vmem:[%s2] sm:$0x3]
    %v113 = vld [vmem:[%s2 + $0x2] sm:$0x3]
    %v114 = vunpack.c.0.s8 %v112
    %v115 = vunpack.c.0.s8 %v113
    %v116 = vpack.c.bf16 %v109, %v106
    %v117 = vld [vmem:[%s3] sm:$0xf]
    %v118 = vld [vmem:[%s3 + $0x4] sm:$0xf]
    %v119 = vld [vmem:[%s3 + $0x8] sm:$0xf]
    %v120 = vld [vmem:[%s3 + $0xc] sm:$0xf]
    %v121 = vld [vmem:[%s3 + $0x10] sm:$0xf]
    %v122 = vld [vmem:[%s3 + $0x14] sm:$0xf]
    %v123 = vld [vmem:[%s3 + $0x18] sm:$0xf]
    %v124 = vld [vmem:[%s3 + $0x1c] sm:$0xf]
    %v125 = vld [vmem:[%s3 + $0x20] sm:$0xf]
    %v126 = vld [vmem:[%s3 + $0x24] sm:$0xf]
    %v127 = vld [vmem:[%s3 + $0x28] sm:$0xf]
    %v128 = vld [vmem:[%s3 + $0x2c] sm:$0xf]
    %v129 = vld [vmem:[%s3 + $0x30] sm:$0xf]
    %v130 = vld [vmem:[%s3 + $0x34] sm:$0xf]
    %v131 = vld [vmem:[%s3 + $0x38] sm:$0xf]
    %v132 = vld [vmem:[%s3 + $0x3c] sm:$0xf]
    %v149 = vunpack.c.l.b16 %v117
    %v150 = vunpack.c.l.b16 %v118
    %v151 = vunpack.c.l.b16 %v119
    %v152 = vunpack.c.l.b16 %v120
    %v153 = vunpack.c.l.b16 %v121
    %v154 = vunpack.c.l.b16 %v122
    %v155 = vunpack.c.l.b16 %v123
    %v156 = vunpack.c.l.b16 %v124
    %v157 = vunpack.c.l.b16 %v125
    %v158 = vunpack.c.l.b16 %v126
    %v159 = vunpack.c.l.b16 %v127
    %v160 = vunpack.c.l.b16 %v128
    %v161 = vunpack.c.l.b16 %v129
    %v162 = vunpack.c.l.b16 %v130
    %v163 = vunpack.c.l.b16 %v131
    %v164 = vunpack.c.l.b16 %v132
    %v165 = vpack.c.b16 %v150, %v149
    %v166 = vpack.c.b16 %v152, %v151
    %v167 = vpack.c.b16 %v154, %v153
    %v168 = vpack.c.b16 %v156, %v155
    %v169 = vpack.c.b16 %v158, %v157
    %v170 = vpack.c.b16 %v160, %v159
    %v171 = vpack.c.b16 %v162, %v161
    %v172 = vpack.c.b16 %v164, %v163
    %181 = vmatprep.subr.bf16.mxu0 0
    %182 = vmatpush1.bf16.msra.mxu0 %v172
    %183 = vmatprep.subr.bf16.mxu0 0
    %184 = vmatpush1.bf16.msra.mxu0 %v171
    %185 = vmatprep.subr.bf16.mxu0 0
    %186 = vmatpush1.bf16.msra.mxu0 %v170
    %187 = vmatprep.subr.bf16.mxu0 0
    %188 = vmatpush1.bf16.msra.mxu0 %v169
    %189 = vmatprep.subr.bf16.mxu0 0
    %190 = vmatpush1.bf16.msra.mxu0 %v168
    %191 = vmatprep.subr.bf16.mxu0 0
    %192 = vmatpush1.bf16.msra.mxu0 %v167
    %193 = vmatprep.subr.bf16.mxu0 0
    %194 = vmatpush1.bf16.msra.mxu0 %v166
    %195 = vmatprep.subr.bf16.mxu0 0
    %196 = vmatpush1.bf16.msra.mxu0 %v165
    %197 = vmatprep.subr.bf16.mxu0 0
    %198 = vmatpush2.bf16.msra.mxu0 0
    %199 = vmatprep.subr.bf16.mxu0 0
    %200 = vmatpush2.bf16.msra.mxu0 0
    %201 = vmatprep.subr.bf16.mxu0 0
    %202 = vmatpush2.bf16.msra.mxu0 0
    %203 = vmatprep.subr.bf16.mxu0 0
    %204 = vmatpush2.bf16.msra.mxu0 0
    %205 = vmatprep.subr.bf16.mxu0 0
    %206 = vmatpush2.bf16.msra.mxu0 0
    %207 = vmatprep.subr.bf16.mxu0 0
    %208 = vmatpush2.bf16.msra.mxu0 0
    %209 = vmatprep.subr.bf16.mxu0 0
    %210 = vmatpush2.bf16.msra.mxu0 0
    %211 = vmatprep.subr.bf16.mxu0 0
    %212 = vmatpush2.bf16.msra.mxu0 0
    %213 = vmatprep.mubr.bf16.mxu0 0
    %214 = vmatmul.mubr.bf16.gmra.mxu0 %v116
    %v215 = vpop.f32.mrf.mxu0
    %v216 = vadd.f32 0.0, %v215
    %v217 = vpop.f32.mrf.mxu0
    %v218 = vpop.f32.mrf.mxu0
    %v219 = vadd.f32 0.0, %v218
    %v220 = vpop.f32.mrf.mxu0
    %221 = vdwg.mxu0
    %v222 = vld [vmem:[%s4] sm:$0x1]
    %v224 = vlaneseq
    %v225 = vshrl.u32 %v224, 7
    %v226 = vsub.s32 0, %v225
    %v227 = vrot.slane %v222, %v226
    %v229 = vmul.f32 %v216, %v227
    %v230 = vmul.f32 %v219, %v227
    %231 = vadd.xlane.f32.xlu0 %v229
    %v232 = vpop.xlane.xlu0 %231
    %233 = vadd.xlane.f32.xlu0 %v230
    %v234 = vpop.xlane.xlu0 %233
    %v235 = vld [vmem:[%s5] sm:$0x1]
    %v237 = vlaneseq
    %v238 = vshrl.u32 %v237, 7
    %v239 = vsub.s32 0, %v238
    %v240 = vrot.slane %v235, %v239
    %v242 = vmul.f32 %v216, %v240
    %v243 = vmul.f32 %v219, %v240
    %244 = vadd.xlane.f32.xlu0 %v242
    %v245 = vpop.xlane.xlu0 %244
    %246 = vadd.xlane.f32.xlu0 %v243
    %v247 = vpop.xlane.xlu0 %246
    %248 = vxpose.xlu0.b32.start [1/16] %v232, 128
    %249 = vxpose.xlu0.b32.cont [2/16] %v234, 128
    %250 = vxpose.xlu0.b32.cont [3/16] 0.0, 128
    %251 = vxpose.xlu0.b32.cont [4/16] 0.0, 128
    %252 = vxpose.xlu0.b32.cont [5/16] 0.0, 128
    %253 = vxpose.xlu0.b32.cont [6/16] 0.0, 128
    %254 = vxpose.xlu0.b32.cont [7/16] 0.0, 128
    %255 = vxpose.xlu0.b32.cont [8/16] 0.0, 128
    %256 = vxpose.xlu0.b32.cont [9/16] 0.0, 128
    %257 = vxpose.xlu0.b32.cont [10/16] 0.0, 128
    %258 = vxpose.xlu0.b32.cont [11/16] 0.0, 128
    %259 = vxpose.xlu0.b32.cont [12/16] 0.0, 128
    %260 = vxpose.xlu0.b32.cont [13/16] 0.0, 128
    %261 = vxpose.xlu0.b32.cont [14/16] 0.0, 128
    %262 = vxpose.xlu0.b32.cont [15/16] 0.0, 128
    %263 = vxpose.xlu0.b32.end [16/16] 0.0, 128
    %v264 = vpop.trf.xlu0
    %v265 = vpop.trf.xlu0
    %v266 = vpop.trf.xlu0
    %v267 = vpop.trf.xlu0
    %v268 = vpop.trf.xlu0
    %v269 = vpop.trf.xlu0
    %v270 = vpop.trf.xlu0
    %v271 = vpop.trf.xlu0
    %v272 = vpop.trf.xlu0
    %v273 = vpop.trf.xlu0
    %v274 = vpop.trf.xlu0
    %v275 = vpop.trf.xlu0
    %v276 = vpop.trf.xlu0
    %v277 = vpop.trf.xlu0
    %v278 = vpop.trf.xlu0
    %v279 = vpop.trf.xlu0
    %v280 = vlaneseq
    %v281 = vshrl.u32 %v280, 7
    %v282 = vsub.s32 0, %v281
    %v283 = vrot.slane %v264, %v282
    %v284 = vadd.f32 %v245, %v283
    %v285 = vadd.f32 %v247, %v283
    %vm286 = vcmp.gt.f32.partialorder %v284, 0.0
    %vm287 = vcmp.gt.f32.partialorder %v285, 0.0
    %v288 = vmul.f32 %v284, 0.2
    %v289 = vmul.f32 %v285, 0.2
    %v290 = vsel %vm286, %v284, %v288
    %v291 = vsel %vm287, %v285, %v289
    %vm292 = vcmp.gt.s32.totalorder %v114, 0
    %vm293 = vcmp.gt.s32.totalorder %v115, 0
    %v294 = vsel %vm292, %v290, -1e+30
    %v295 = vsel %vm293, %v291, -1e+30
    %vm296 = vcmask 130048
    %v297 = vsel %vm296, %v294, -inf
    %298 = vmax.xlane.f32.xlu0 %v297
    %v299 = vpop.xlane.xlu0 %298
    %v300 = vsel %vm296, %v295, -inf
    %301 = vmax.xlane.f32.xlu0 %v300
    %v302 = vpop.xlane.xlu0 %301
    %v303 = vsub.f32 %v294, %v299
    %v304 = vsub.f32 %v295, %v302
    %v305 = vmul.f32 %v303, 1.442695
    %v306 = vpow.pop %v305
    %v307 = vmul.f32 %v304, 1.442695
    %v308 = vpow.pop %v307
    %v309 = vlaneseq
    %v310 = vand.u32 %v309, 127
    %vm311 = vcmp.eq.s32.totalorder %v310, 16
    %v312 = vsel %vm311, 1.0, %v216
    %v313 = vsel %vm311, 1.0, %v219
    %v314 = vpack.c.bf16 %v308, %v306
    %v315 = vpack.c.bf16 %v313, %v312
    %v317 = vsel %vm296, %v314, 0
    %319 = vmatprep.subr.bf16.mxu0 0
    %320 = vmatpush1.bf16.msra.mxu0 0
    %321 = vmatprep.subr.bf16.mxu0 0
    %322 = vmatpush1.bf16.msra.mxu0 0
    %323 = vmatprep.subr.bf16.mxu0 0
    %324 = vmatpush1.bf16.msra.mxu0 0
    %325 = vmatprep.subr.bf16.mxu0 0
    %326 = vmatpush1.bf16.msra.mxu0 0
    %327 = vmatprep.subr.bf16.mxu0 0
    %328 = vmatpush1.bf16.msra.mxu0 0
    %329 = vmatprep.subr.bf16.mxu0 0
    %330 = vmatpush1.bf16.msra.mxu0 0
    %331 = vmatprep.subr.bf16.mxu0 0
    %332 = vmatpush1.bf16.msra.mxu0 0
    %333 = vmatprep.subr.bf16.mxu0 0
    %334 = vmatpush1.bf16.msra.mxu0 %v315
    %335 = vmatprep.subr.bf16.mxu0 0
    %336 = vmatpush2.bf16.msra.mxu0 0
    %337 = vmatprep.subr.bf16.mxu0 0
    %338 = vmatpush2.bf16.msra.mxu0 0
    %339 = vmatprep.subr.bf16.mxu0 0
    %340 = vmatpush2.bf16.msra.mxu0 0
    %341 = vmatprep.subr.bf16.mxu0 0
    %342 = vmatpush2.bf16.msra.mxu0 0
    %343 = vmatprep.subr.bf16.mxu0 0
    %344 = vmatpush2.bf16.msra.mxu0 0
    %345 = vmatprep.subr.bf16.mxu0 0
    %346 = vmatpush2.bf16.msra.mxu0 0
    %347 = vmatprep.subr.bf16.mxu0 0
    %348 = vmatpush2.bf16.msra.mxu0 0
    %349 = vmatprep.subr.bf16.mxu0 0
    %350 = vmatpush2.bf16.msra.mxu0 0
    %351 = vmatprep.mubr.bf16.mxu0 0
    %352 = vmatmul.mubr.bf16.gmra.mxu0 %v317
    %v353 = vpop.f32.mrf.mxu0
    %v354 = vadd.f32 0.0, %v353
    %v355 = vpop.f32.mrf.mxu0
    %v356 = vpop.f32.mrf.mxu0
    %v357 = vadd.f32 0.0, %v356
    %v358 = vpop.f32.mrf.mxu0
    %359 = vdwg.mxu0
    %v360 = vrcp.pop %v354
    %v361 = vrcp.pop %v357
    %363 = vset.pattern.permute.xlu0 16
    %364 = vperm.xlu0 %363, %v360
    %v365 = vpop.permute.xlu0 %364
    %368 = vset.pattern.permute.xlu0 16
    %369 = vperm.xlu0 %368, %v361
    %v370 = vpop.permute.xlu0 %369
    %v372 = vmul.f32 %v354, %v365
    %v373 = vmul.f32 %v357, %v370
    %v374 = vld [vmem:[%s6] sm:$0x1]
    %v376 = vlaneseq
    %v377 = vshrl.u32 %v376, 7
    %v378 = vsub.s32 0, %v377
    %v379 = vrot.slane %v374, %v378
    %v381 = vadd.f32 %v372, %v379
    %v382 = vadd.f32 %v373, %v379
    %v383 = vmax.f32 %v381, 0.0
    %v384 = vmax.f32 %v382, 0.0
    %v385 = vpack.c.bf16 %v384, %v383
    %v386 = vld [vmem:[%s7] sm:$0xf]
    %v387 = vld [vmem:[%s7 + $0x4] sm:$0xf]
    %v388 = vld [vmem:[%s7 + $0x8] sm:$0xf]
    %v389 = vld [vmem:[%s7 + $0xc] sm:$0xf]
    %v390 = vld [vmem:[%s7 + $0x10] sm:$0xf]
    %v391 = vld [vmem:[%s7 + $0x14] sm:$0xf]
    %v392 = vld [vmem:[%s7 + $0x18] sm:$0xf]
    %v393 = vld [vmem:[%s7 + $0x1c] sm:$0xf]
    %v394 = vld [vmem:[%s7 + $0x20] sm:$0xf]
    %v395 = vld [vmem:[%s7 + $0x24] sm:$0xf]
    %v396 = vld [vmem:[%s7 + $0x28] sm:$0xf]
    %v397 = vld [vmem:[%s7 + $0x2c] sm:$0xf]
    %v398 = vld [vmem:[%s7 + $0x30] sm:$0xf]
    %v399 = vld [vmem:[%s7 + $0x34] sm:$0xf]
    %v400 = vld [vmem:[%s7 + $0x38] sm:$0xf]
    %v401 = vld [vmem:[%s7 + $0x3c] sm:$0xf]
    %v418 = vunpack.c.l.b16 %v386
    %v419 = vunpack.c.l.b16 %v387
    %v420 = vunpack.c.l.b16 %v388
    %v421 = vunpack.c.l.b16 %v389
    %v422 = vunpack.c.l.b16 %v390
    %v423 = vunpack.c.l.b16 %v391
    %v424 = vunpack.c.l.b16 %v392
    %v425 = vunpack.c.l.b16 %v393
    %v426 = vunpack.c.l.b16 %v394
    %v427 = vunpack.c.l.b16 %v395
    %v428 = vunpack.c.l.b16 %v396
    %v429 = vunpack.c.l.b16 %v397
    %v430 = vunpack.c.l.b16 %v398
    %v431 = vunpack.c.l.b16 %v399
    %v432 = vunpack.c.l.b16 %v400
    %v433 = vunpack.c.l.b16 %v401
    %v434 = vpack.c.b16 %v419, %v418
    %v435 = vpack.c.b16 %v421, %v420
    %v436 = vpack.c.b16 %v423, %v422
    %v437 = vpack.c.b16 %v425, %v424
    %v438 = vpack.c.b16 %v427, %v426
    %v439 = vpack.c.b16 %v429, %v428
    %v440 = vpack.c.b16 %v431, %v430
    %v441 = vpack.c.b16 %v433, %v432
    %450 = vmatprep.subr.bf16.mxu0 0
    %451 = vmatpush1.bf16.msra.mxu0 %v441
    %452 = vmatprep.subr.bf16.mxu0 0
    %453 = vmatpush1.bf16.msra.mxu0 %v440
    %454 = vmatprep.subr.bf16.mxu0 0
    %455 = vmatpush1.bf16.msra.mxu0 %v439
    %456 = vmatprep.subr.bf16.mxu0 0
    %457 = vmatpush1.bf16.msra.mxu0 %v438
    %458 = vmatprep.subr.bf16.mxu0 0
    %459 = vmatpush1.bf16.msra.mxu0 %v437
    %460 = vmatprep.subr.bf16.mxu0 0
    %461 = vmatpush1.bf16.msra.mxu0 %v436
    %462 = vmatprep.subr.bf16.mxu0 0
    %463 = vmatpush1.bf16.msra.mxu0 %v435
    %464 = vmatprep.subr.bf16.mxu0 0
    %465 = vmatpush1.bf16.msra.mxu0 %v434
    %466 = vmatprep.subr.bf16.mxu0 0
    %467 = vmatpush2.bf16.msra.mxu0 0
    %468 = vmatprep.subr.bf16.mxu0 0
    %469 = vmatpush2.bf16.msra.mxu0 0
    %470 = vmatprep.subr.bf16.mxu0 0
    %471 = vmatpush2.bf16.msra.mxu0 0
    %472 = vmatprep.subr.bf16.mxu0 0
    %473 = vmatpush2.bf16.msra.mxu0 0
    %474 = vmatprep.subr.bf16.mxu0 0
    %475 = vmatpush2.bf16.msra.mxu0 0
    %476 = vmatprep.subr.bf16.mxu0 0
    %477 = vmatpush2.bf16.msra.mxu0 0
    %478 = vmatprep.subr.bf16.mxu0 0
    %479 = vmatpush2.bf16.msra.mxu0 0
    %480 = vmatprep.subr.bf16.mxu0 0
    %481 = vmatpush2.bf16.msra.mxu0 0
    %482 = vmatprep.mubr.bf16.mxu0 0
    %483 = vmatmul.mubr.bf16.gmra.mxu0 %v385
    %v484 = vpop.f32.mrf.mxu0
    %v485 = vadd.f32 0.0, %v484
    %v486 = vpop.f32.mrf.mxu0
    %v487 = vpop.f32.mrf.mxu0
    %v488 = vadd.f32 0.0, %v487
    %v489 = vpop.f32.mrf.mxu0
    %490 = vdwg.mxu0
    %v491 = vld [vmem:[%s8] sm:$0x1]
    %v493 = vlaneseq
    %v494 = vshrl.u32 %v493, 7
    %v495 = vsub.s32 0, %v494
    %v496 = vrot.slane %v491, %v495
    %v498 = vmul.f32 %v485, %v496
    %v499 = vmul.f32 %v488, %v496
    %500 = vadd.xlane.f32.xlu0 %v498
    %v501 = vpop.xlane.xlu0 %500
    %502 = vadd.xlane.f32.xlu0 %v499
    %v503 = vpop.xlane.xlu0 %502
    %v504 = vld [vmem:[%s9] sm:$0x1]
    %v506 = vlaneseq
    %v507 = vshrl.u32 %v506, 7
    %v508 = vsub.s32 0, %v507
    %v509 = vrot.slane %v504, %v508
    %v511 = vmul.f32 %v485, %v509
    %v512 = vmul.f32 %v488, %v509
    %513 = vadd.xlane.f32.xlu0 %v511
    %v514 = vpop.xlane.xlu0 %513
    %515 = vadd.xlane.f32.xlu0 %v512
    %v516 = vpop.xlane.xlu0 %515
    %517 = vxpose.xlu0.b32.start [1/16] %v501, 128
    %518 = vxpose.xlu0.b32.cont [2/16] %v503, 128
    %519 = vxpose.xlu0.b32.cont [3/16] 0.0, 128
    %520 = vxpose.xlu0.b32.cont [4/16] 0.0, 128
    %521 = vxpose.xlu0.b32.cont [5/16] 0.0, 128
    %522 = vxpose.xlu0.b32.cont [6/16] 0.0, 128
    %523 = vxpose.xlu0.b32.cont [7/16] 0.0, 128
    %524 = vxpose.xlu0.b32.cont [8/16] 0.0, 128
    %525 = vxpose.xlu0.b32.cont [9/16] 0.0, 128
    %526 = vxpose.xlu0.b32.cont [10/16] 0.0, 128
    %527 = vxpose.xlu0.b32.cont [11/16] 0.0, 128
    %528 = vxpose.xlu0.b32.cont [12/16] 0.0, 128
    %529 = vxpose.xlu0.b32.cont [13/16] 0.0, 128
    %530 = vxpose.xlu0.b32.cont [14/16] 0.0, 128
    %531 = vxpose.xlu0.b32.cont [15/16] 0.0, 128
    %532 = vxpose.xlu0.b32.end [16/16] 0.0, 128
    %v533 = vpop.trf.xlu0
    %v534 = vpop.trf.xlu0
    %v535 = vpop.trf.xlu0
    %v536 = vpop.trf.xlu0
    %v537 = vpop.trf.xlu0
    %v538 = vpop.trf.xlu0
    %v539 = vpop.trf.xlu0
    %v540 = vpop.trf.xlu0
    %v541 = vpop.trf.xlu0
    %v542 = vpop.trf.xlu0
    %v543 = vpop.trf.xlu0
    %v544 = vpop.trf.xlu0
    %v545 = vpop.trf.xlu0
    %v546 = vpop.trf.xlu0
    %v547 = vpop.trf.xlu0
    %v548 = vpop.trf.xlu0
    %v549 = vlaneseq
    %v550 = vshrl.u32 %v549, 7
    %v551 = vsub.s32 0, %v550
    %v552 = vrot.slane %v533, %v551
    %v553 = vadd.f32 %v514, %v552
    %v554 = vadd.f32 %v516, %v552
    %vm555 = vcmp.gt.f32.partialorder %v553, 0.0
    %vm556 = vcmp.gt.f32.partialorder %v554, 0.0
    %v557 = vmul.f32 %v553, 0.2
    %v558 = vmul.f32 %v554, 0.2
    %v559 = vsel %vm555, %v553, %v557
    %v560 = vsel %vm556, %v554, %v558
    %v561 = vsel %vm292, %v559, -1e+30
    %v562 = vsel %vm293, %v560, -1e+30
    %v563 = vsel %vm296, %v561, -inf
    %564 = vmax.xlane.f32.xlu0 %v563
    %v565 = vpop.xlane.xlu0 %564
    %v566 = vsel %vm296, %v562, -inf
    %567 = vmax.xlane.f32.xlu0 %v566
    %v568 = vpop.xlane.xlu0 %567
    %v569 = vsub.f32 %v561, %v565
    %v570 = vsub.f32 %v562, %v568
    %v571 = vmul.f32 %v569, 1.442695
    %v572 = vpow.pop %v571
    %v573 = vmul.f32 %v570, 1.442695
    %v574 = vpow.pop %v573
    %v575 = vsel %vm311, 1.0, %v485
    %v576 = vsel %vm311, 1.0, %v488
    %v577 = vpack.c.bf16 %v574, %v572
    %v578 = vpack.c.bf16 %v576, %v575
    %v580 = vsel %vm296, %v577, 0
    %582 = vmatprep.subr.bf16.mxu0 0
    %583 = vmatpush1.bf16.msra.mxu0 0
    %584 = vmatprep.subr.bf16.mxu0 0
    %585 = vmatpush1.bf16.msra.mxu0 0
    %586 = vmatprep.subr.bf16.mxu0 0
    %587 = vmatpush1.bf16.msra.mxu0 0
    %588 = vmatprep.subr.bf16.mxu0 0
    %589 = vmatpush1.bf16.msra.mxu0 0
    %590 = vmatprep.subr.bf16.mxu0 0
    %591 = vmatpush1.bf16.msra.mxu0 0
    %592 = vmatprep.subr.bf16.mxu0 0
    %593 = vmatpush1.bf16.msra.mxu0 0
    %594 = vmatprep.subr.bf16.mxu0 0
    %595 = vmatpush1.bf16.msra.mxu0 0
    %596 = vmatprep.subr.bf16.mxu0 0
    %597 = vmatpush1.bf16.msra.mxu0 %v578
    %598 = vmatprep.subr.bf16.mxu0 0
    %599 = vmatpush2.bf16.msra.mxu0 0
    %600 = vmatprep.subr.bf16.mxu0 0
    %601 = vmatpush2.bf16.msra.mxu0 0
    %602 = vmatprep.subr.bf16.mxu0 0
    %603 = vmatpush2.bf16.msra.mxu0 0
    %604 = vmatprep.subr.bf16.mxu0 0
    %605 = vmatpush2.bf16.msra.mxu0 0
    %606 = vmatprep.subr.bf16.mxu0 0
    %607 = vmatpush2.bf16.msra.mxu0 0
    %608 = vmatprep.subr.bf16.mxu0 0
    %609 = vmatpush2.bf16.msra.mxu0 0
    %610 = vmatprep.subr.bf16.mxu0 0
    %611 = vmatpush2.bf16.msra.mxu0 0
    %612 = vmatprep.subr.bf16.mxu0 0
    %613 = vmatpush2.bf16.msra.mxu0 0
    %614 = vmatprep.mubr.bf16.mxu0 0
    %615 = vmatmul.mubr.bf16.gmra.mxu0 %v580
    %v616 = vpop.f32.mrf.mxu0
    %v617 = vadd.f32 0.0, %v616
    %v618 = vpop.f32.mrf.mxu0
    %v619 = vpop.f32.mrf.mxu0
    %v620 = vadd.f32 0.0, %v619
    %v621 = vpop.f32.mrf.mxu0
    %622 = vdwg.mxu0
    %v623 = vrcp.pop %v617
    %v624 = vrcp.pop %v620
    %626 = vset.pattern.permute.xlu0 16
    %627 = vperm.xlu0 %626, %v623
    %v628 = vpop.permute.xlu0 %627
    %631 = vset.pattern.permute.xlu0 16
    %632 = vperm.xlu0 %631, %v624
    %v633 = vpop.permute.xlu0 %632
    %v635 = vmul.f32 %v617, %v628
    %v636 = vmul.f32 %v620, %v633
    %v637 = vld [vmem:[%s10] sm:$0x1]
    %v639 = vlaneseq
    %v640 = vshrl.u32 %v639, 7
    %v641 = vsub.s32 0, %v640
    %v642 = vrot.slane %v637, %v641
    %v644 = vadd.f32 %v635, %v642
    %v645 = vadd.f32 %v636, %v642
    %v646 = vld [vmem:[%s11] sm:$0x1]
    %v647 = vpack.c.bf16 %v645, %v644
    %v649 = vsel %vm296, %v646, 0
    %651 = vmatprep.subr.bf16.mxu0 0
    %652 = vmatpush1.bf16.msra.mxu0 0
    %653 = vmatprep.subr.bf16.mxu0 0
    %654 = vmatpush1.bf16.msra.mxu0 0
    %655 = vmatprep.subr.bf16.mxu0 0
    %656 = vmatpush1.bf16.msra.mxu0 0
    %657 = vmatprep.subr.bf16.mxu0 0
    %658 = vmatpush1.bf16.msra.mxu0 0
    %659 = vmatprep.subr.bf16.mxu0 0
    %660 = vmatpush1.bf16.msra.mxu0 0
    %661 = vmatprep.subr.bf16.mxu0 0
    %662 = vmatpush1.bf16.msra.mxu0 0
    %663 = vmatprep.subr.bf16.mxu0 0
    %664 = vmatpush1.bf16.msra.mxu0 0
    %665 = vmatprep.subr.bf16.mxu0 0
    %666 = vmatpush1.bf16.msra.mxu0 %v647
    %667 = vmatprep.subr.bf16.mxu0 0
    %668 = vmatpush2.bf16.msra.mxu0 0
    %669 = vmatprep.subr.bf16.mxu0 0
    %670 = vmatpush2.bf16.msra.mxu0 0
    %671 = vmatprep.subr.bf16.mxu0 0
    %672 = vmatpush2.bf16.msra.mxu0 0
    %673 = vmatprep.subr.bf16.mxu0 0
    %674 = vmatpush2.bf16.msra.mxu0 0
    %675 = vmatprep.subr.bf16.mxu0 0
    %676 = vmatpush2.bf16.msra.mxu0 0
    %677 = vmatprep.subr.bf16.mxu0 0
    %678 = vmatpush2.bf16.msra.mxu0 0
    %679 = vmatprep.subr.bf16.mxu0 0
    %680 = vmatpush2.bf16.msra.mxu0 0
    %681 = vmatprep.subr.bf16.mxu0 0
    %682 = vmatpush2.bf16.msra.mxu0 0
    %683 = vmatprep.mubr.bf16.mxu0 0
    %684 = vmatmul.mubr.bf16.gmra.mxu0 %v649
    %v685 = vpop.f32.mrf.mxu0
    %v686 = vadd.f32 0.0, %v685
    %v687 = vpop.f32.mrf.mxu0
    %v688 = vpop.f32.mrf.mxu0
    %v689 = vpop.f32.mrf.mxu0
    %690 = vdwg.mxu0
    %v691 = vpack.c.bf16 %v686, %v686
    %v692 = vld [vmem:[%s12] sm:$0xf]
    %v693 = vld [vmem:[%s12 + $0x4] sm:$0xf]
    %v694 = vld [vmem:[%s12 + $0x8] sm:$0xf]
    %v695 = vld [vmem:[%s12 + $0xc] sm:$0xf]
    %v696 = vld [vmem:[%s12 + $0x10] sm:$0xf]
    %v697 = vld [vmem:[%s12 + $0x14] sm:$0xf]
    %v698 = vld [vmem:[%s12 + $0x18] sm:$0xf]
    %v699 = vld [vmem:[%s12 + $0x1c] sm:$0xf]
    %v700 = vld [vmem:[%s12 + $0x20] sm:$0xf]
    %v701 = vld [vmem:[%s12 + $0x24] sm:$0xf]
    %v702 = vld [vmem:[%s12 + $0x28] sm:$0xf]
    %v703 = vld [vmem:[%s12 + $0x2c] sm:$0xf]
    %v704 = vld [vmem:[%s12 + $0x30] sm:$0xf]
    %v705 = vld [vmem:[%s12 + $0x34] sm:$0xf]
    %v706 = vld [vmem:[%s12 + $0x38] sm:$0xf]
    %v707 = vld [vmem:[%s12 + $0x3c] sm:$0xf]
    %v708 = vld [vmem:[%s13] sm:$0x1]
    %v710 = vlaneseq
    %v711 = vshrl.u32 %v710, 7
    %v712 = vsub.s32 0, %v711
    %v713 = vrot.slane %v708, %v712
    %v731 = vunpack.c.l.b16 %v692
    %v732 = vunpack.c.l.b16 %v693
    %v733 = vunpack.c.l.b16 %v694
    %v734 = vunpack.c.l.b16 %v695
    %v735 = vunpack.c.l.b16 %v696
    %v736 = vunpack.c.l.b16 %v697
    %v737 = vunpack.c.l.b16 %v698
    %v738 = vunpack.c.l.b16 %v699
    %v739 = vunpack.c.l.b16 %v700
    %v740 = vunpack.c.l.b16 %v701
    %v741 = vunpack.c.l.b16 %v702
    %v742 = vunpack.c.l.b16 %v703
    %v743 = vunpack.c.l.b16 %v704
    %v744 = vunpack.c.l.b16 %v705
    %v745 = vunpack.c.l.b16 %v706
    %v746 = vunpack.c.l.b16 %v707
    %v747 = vpack.c.b16 %v732, %v731
    %v748 = vpack.c.b16 %v734, %v733
    %v749 = vpack.c.b16 %v736, %v735
    %v750 = vpack.c.b16 %v738, %v737
    %v751 = vpack.c.b16 %v740, %v739
    %v752 = vpack.c.b16 %v742, %v741
    %v753 = vpack.c.b16 %v744, %v743
    %v754 = vpack.c.b16 %v746, %v745
    %763 = vmatprep.subr.bf16.mxu0 0
    %764 = vmatpush1.bf16.msra.mxu0 %v754
    %765 = vmatprep.subr.bf16.mxu0 0
    %766 = vmatpush1.bf16.msra.mxu0 %v753
    %767 = vmatprep.subr.bf16.mxu0 0
    %768 = vmatpush1.bf16.msra.mxu0 %v752
    %769 = vmatprep.subr.bf16.mxu0 0
    %770 = vmatpush1.bf16.msra.mxu0 %v751
    %771 = vmatprep.subr.bf16.mxu0 0
    %772 = vmatpush1.bf16.msra.mxu0 %v750
    %773 = vmatprep.subr.bf16.mxu0 0
    %774 = vmatpush1.bf16.msra.mxu0 %v749
    %775 = vmatprep.subr.bf16.mxu0 0
    %776 = vmatpush1.bf16.msra.mxu0 %v748
    %777 = vmatprep.subr.bf16.mxu0 0
    %778 = vmatpush1.bf16.msra.mxu0 %v747
    %779 = vmatprep.subr.bf16.mxu0 0
    %780 = vmatpush2.bf16.msra.mxu0 0
    %781 = vmatprep.subr.bf16.mxu0 0
    %782 = vmatpush2.bf16.msra.mxu0 0
    %783 = vmatprep.subr.bf16.mxu0 0
    %784 = vmatpush2.bf16.msra.mxu0 0
    %785 = vmatprep.subr.bf16.mxu0 0
    %786 = vmatpush2.bf16.msra.mxu0 0
    %787 = vmatprep.subr.bf16.mxu0 0
    %788 = vmatpush2.bf16.msra.mxu0 0
    %789 = vmatprep.subr.bf16.mxu0 0
    %790 = vmatpush2.bf16.msra.mxu0 0
    %791 = vmatprep.subr.bf16.mxu0 0
    %792 = vmatpush2.bf16.msra.mxu0 0
    %793 = vmatprep.subr.bf16.mxu0 0
    %794 = vmatpush2.bf16.msra.mxu0 0
    %795 = vmatprep.mubr.bf16.mxu0 0
    %796 = vmatmul.mubr.bf16.gmra.mxu0 %v691
    %v797 = vpop.f32.mrf.mxu0
    %v798 = vadd.f32 %v713, %v797
    %v799 = vpop.f32.mrf.mxu0
    %v800 = vpop.f32.mrf.mxu0
    %v801 = vpop.f32.mrf.mxu0
    %802 = vdwg.mxu0
    %v803 = vmax.f32 %v798, 0.0
    %v804 = vpack.c.bf16 %v803, %v803
    %v805 = vld [vmem:[%s14] sm:$0xf]
    %v806 = vld [vmem:[%s14 + $0x4] sm:$0xf]
    %v807 = vld [vmem:[%s14 + $0x8] sm:$0xf]
    %v808 = vld [vmem:[%s14 + $0xc] sm:$0xf]
    %v809 = vld [vmem:[%s14 + $0x10] sm:$0xf]
    %v810 = vld [vmem:[%s14 + $0x14] sm:$0xf]
    %v811 = vld [vmem:[%s14 + $0x18] sm:$0xf]
    %v812 = vld [vmem:[%s14 + $0x1c] sm:$0xf]
    %v813 = vld [vmem:[%s14 + $0x20] sm:$0xf]
    %v814 = vld [vmem:[%s14 + $0x24] sm:$0xf]
    %v815 = vld [vmem:[%s14 + $0x28] sm:$0xf]
    %v816 = vld [vmem:[%s14 + $0x2c] sm:$0xf]
    %v817 = vld [vmem:[%s14 + $0x30] sm:$0xf]
    %v818 = vld [vmem:[%s14 + $0x34] sm:$0xf]
    %v819 = vld [vmem:[%s14 + $0x38] sm:$0xf]
    %v820 = vld [vmem:[%s14 + $0x3c] sm:$0xf]
    %v821 = vld [vmem:[%s15] sm:$0x1]
    %v823 = vlaneseq
    %v824 = vshrl.u32 %v823, 7
    %v825 = vsub.s32 0, %v824
    %v826 = vrot.slane %v821, %v825
    %v844 = vunpack.c.l.b16 %v805
    %v845 = vunpack.c.l.b16 %v806
    %v846 = vunpack.c.l.b16 %v807
    %v847 = vunpack.c.l.b16 %v808
    %v848 = vunpack.c.l.b16 %v809
    %v849 = vunpack.c.l.b16 %v810
    %v850 = vunpack.c.l.b16 %v811
    %v851 = vunpack.c.l.b16 %v812
    %v852 = vunpack.c.l.b16 %v813
    %v853 = vunpack.c.l.b16 %v814
    %v854 = vunpack.c.l.b16 %v815
    %v855 = vunpack.c.l.b16 %v816
    %v856 = vunpack.c.l.b16 %v817
    %v857 = vunpack.c.l.b16 %v818
    %v858 = vunpack.c.l.b16 %v819
    %v859 = vunpack.c.l.b16 %v820
    %v860 = vpack.c.b16 %v845, %v844
    %v861 = vpack.c.b16 %v847, %v846
    %v862 = vpack.c.b16 %v849, %v848
    %v863 = vpack.c.b16 %v851, %v850
    %v864 = vpack.c.b16 %v853, %v852
    %v865 = vpack.c.b16 %v855, %v854
    %v866 = vpack.c.b16 %v857, %v856
    %v867 = vpack.c.b16 %v859, %v858
    %876 = vmatprep.subr.bf16.mxu0 0
    %877 = vmatpush1.bf16.msra.mxu0 %v867
    %878 = vmatprep.subr.bf16.mxu0 0
    %879 = vmatpush1.bf16.msra.mxu0 %v866
    %880 = vmatprep.subr.bf16.mxu0 0
    %881 = vmatpush1.bf16.msra.mxu0 %v865
    %882 = vmatprep.subr.bf16.mxu0 0
    %883 = vmatpush1.bf16.msra.mxu0 %v864
    %884 = vmatprep.subr.bf16.mxu0 0
    %885 = vmatpush1.bf16.msra.mxu0 %v863
    %886 = vmatprep.subr.bf16.mxu0 0
    %887 = vmatpush1.bf16.msra.mxu0 %v862
    %888 = vmatprep.subr.bf16.mxu0 0
    %889 = vmatpush1.bf16.msra.mxu0 %v861
    %890 = vmatprep.subr.bf16.mxu0 0
    %891 = vmatpush1.bf16.msra.mxu0 %v860
    %892 = vmatprep.subr.bf16.mxu0 0
    %893 = vmatpush2.bf16.msra.mxu0 0
    %894 = vmatprep.subr.bf16.mxu0 0
    %895 = vmatpush2.bf16.msra.mxu0 0
    %896 = vmatprep.subr.bf16.mxu0 0
    %897 = vmatpush2.bf16.msra.mxu0 0
    %898 = vmatprep.subr.bf16.mxu0 0
    %899 = vmatpush2.bf16.msra.mxu0 0
    %900 = vmatprep.subr.bf16.mxu0 0
    %901 = vmatpush2.bf16.msra.mxu0 0
    %902 = vmatprep.subr.bf16.mxu0 0
    %903 = vmatpush2.bf16.msra.mxu0 0
    %904 = vmatprep.subr.bf16.mxu0 0
    %905 = vmatpush2.bf16.msra.mxu0 0
    %906 = vmatprep.subr.bf16.mxu0 0
    %907 = vmatpush2.bf16.msra.mxu0 0
    %908 = vmatprep.mubr.bf16.mxu0 0
    %909 = vmatmul.mubr.bf16.gmra.mxu0 %v804
    %v910 = vpop.f32.mrf.mxu0
    %v911 = vadd.f32 %v826, %v910
    %v912 = vpop.f32.mrf.mxu0
    %v913 = vpop.f32.mrf.mxu0
    %v914 = vpop.f32.mrf.mxu0
    %915 = vdwg.mxu0
    %916 = vst [vmem:[#allocation2] sm:$0x3] %v911
    // Predicated region
    $region66: #{gat_layer2_forward.1} parent=1 // pred_check
      _
    $region67: #{gat_layer2_forward.1} parent=1 // pred_check_branch
      %918 = sbr.rel (0) target = $region69
    $region68: #{gat_layer2_forward.1} parent=1 // pred_region
      %s920 = ssub.s32 32, 32
      %921 = vsyncadd [#allocation3], %s920
      %s923 = sshll.u32 [#allocation2], 4
      %s924 = int_to_ptr.vmem [resolvable:$true] %s923
      %926 = dma.vmem_to_hbm [thread:$0]  %s924, 32, %s16, [#allocation3]
    $region69: #{gat_layer2_forward.1} parent=1 // pred_fallthru
      _
    // Predicated region
    $region70: #{gat_layer2_forward.1} parent=1 // pred_check
      _
    $region71: #{gat_layer2_forward.1} parent=1 // pred_check_branch
      %928 = sbr.rel (0) target = $region73
    $region72: #{gat_layer2_forward.1} parent=1 // pred_region
      %929 = dma.done [#allocation3], 32
    $region73: #{gat_layer2_forward.1} parent=1 // pred_fallthru
      _
    %930 = vsyncpa [#allocation3], 1

</llo_original>
